<compile_context>
chip_gen: v7x
topology: tpu7x:2x2x1
jax: 0.10.0
libtpu: 0.0.40
codegen_flags: <defaults>
</compile_context>

<pallas_src>
import functools

import jax
import jax.numpy as jnp
from jax.experimental import pallas as pl
from jax.experimental.pallas import tpu as pltpu


def _round_up(x, m):
    return (x + m - 1) // m * m


def rnn_fused_kernel(x_ref, h0_ref, wih_ref, whh_ref, bias_ref, wout_ref, bout_ref,
                     out_ref, hfin_ref, hs_ref, *, seq_len, b_chunk):
    """One batch-chunk of the fused RNN forward (everything resident in VMEM).

    x_ref:    (T, Bc, Ip)   time-major padded input chunk
    h0_ref:   (Bc, Hp)      initial hidden state chunk
    wih_ref:  (Ip, Hp)      W_ih^T (zero-padded)
    whh_ref:  (Hp, Hp)      W_hh^T (zero-padded)
    bias_ref: (1, Hp)       b_ih + b_hh (zero-padded)
    wout_ref: (Hp, Op)      W_out^T (zero-padded)
    bout_ref: (1, Op)       b_out (zero-padded)
    out_ref:  (T, Bc, Op)   head output chunk (Op multiple of 128 -> lane-dense store)
    hfin_ref: (Bc, Hp)      final hidden state chunk
    hs_ref:   (T*Bc, Hp)    VMEM scratch: input projection, overwritten by hidden states
    """
    # 1) Input projection for ALL timesteps in one MXU GEMM; bias folded in once.
    x2d = x_ref[...].reshape(seq_len * b_chunk, -1)
    hs_ref[...] = (
        jnp.dot(x2d, wih_ref[...], preferred_element_type=jnp.float32)
        + bias_ref[...]
    )

    # Hoist the recurrent weight load out of the loop (JAX does not CSE it).
    whh = whh_ref[...]
    # TODO(synk): hold W_hh in MXU weight-staging registers across the loop
    # (pltpu.matmul_push_rhs / matmul_acc_lhs / matmul_pop) to drop the per-step RHS
    # push from the serial critical path.

    # 2) Sequential recurrence: per step only h_prev @ W_hh^T + tanh remains on the
    #    critical path. b_chunk is a multiple of 8, so each per-step slab is a whole
    #    number of (8,128) tiles -> unmasked, aligned vld/vst.
    def step(t, h_prev):
        row = pl.multiple_of(t * b_chunk, b_chunk)  # b_chunk is a multiple of 8
        pre = hs_ref[pl.ds(row, b_chunk), :]
        h_new = jnp.tanh(
            pre + jnp.dot(h_prev, whh, preferred_element_type=jnp.float32)
        )
        hs_ref[pl.ds(row, b_chunk), :] = h_new
        return h_new

    h_last = jax.lax.fori_loop(0, seq_len, step, h0_ref[...].astype(jnp.float32),
                               unroll=min(8, seq_len))

    # 3) Final hidden state written exactly once.
    hfin_ref[...] = h_last.astype(hfin_ref.dtype)

    # 4) Deferred Linear head: one (T*Bc, Hp) @ (Hp, Op) GEMM, one lane-dense store.
    head = (
        jnp.dot(hs_ref[...].astype(wout_ref.dtype), wout_ref[...],
                preferred_element_type=jnp.float32)
        + bout_ref[...]
    )
    out_ref[...] = head.reshape(seq_len, b_chunk, -1).astype(out_ref.dtype)


def simple_rnn_forward(x, h_state, params, *, use_bf16_matmul=False):
    """x: (B, T, I) float32, h_state: (1, B, H) float32.
    Returns (out, h_state_new) with out (1, B*T, O) and h_state_new (1, B, H),
    matching SimpleRNN.forward (batch_first r_out.view(-1, H) -> Linear -> unsqueeze)."""
    B, T, I = x.shape
    H = params["w_hh"].shape[0]
    O = params["w_out"].shape[0]

    # --- Tile-aligned padding: batch -> multiple of 8 sublanes, features -> 128 lanes.
    i_pad = _round_up(I, 128)
    h_pad = _round_up(H, 128)
    o_pad = _round_up(O, 128)

    b_min = _round_up(B, 8)
    # v7x has 2 TensorCores: split larger batches into 2 "parallel" chunks; tiny
    # batches stay as a single 8-row chunk (harmless on v5e/v6e's single TC).
    n_chunks = 2 if b_min > 8 else 1
    b_pad = _round_up(B, 8 * n_chunks)
    b_chunk = b_pad // n_chunks

    # Optional bf16 MXU path for the two big GEMMs (v6e/v7x); recurrence/tanh stay f32.
    mm_dtype = jnp.bfloat16 if use_bf16_matmul else jnp.float32

    # Time-major, padded input: (T, B_pad, I_pad).
    # TODO(synk): with a time-chunked grid the (B,T,I)->(T,B,I) transpose could be
    # folded into the BlockSpec index_map instead of a wrapper-side XLA pass over x.
    x_tm = jnp.transpose(x, (1, 0, 2))
    x_p = jnp.pad(x_tm, ((0, 0), (0, b_pad - B), (0, i_pad - I))).astype(mm_dtype)

    h0_p = jnp.pad(h_state[0], ((0, b_pad - B), (0, h_pad - H)))           # f32
    wih_p = jnp.pad(params["w_ih"].T, ((0, i_pad - I), (0, h_pad - H))).astype(mm_dtype)
    whh_p = jnp.pad(params["w_hh"].T, ((0, h_pad - H), (0, h_pad - H)))    # f32
    bias_p = jnp.pad((params["b_ih"] + params["b_hh"])[None, :],
                     ((0, 0), (0, h_pad - H)))
    wout_p = jnp.pad(params["w_out"].T, ((0, h_pad - H), (0, o_pad - O))).astype(mm_dtype)
    bout_p = jnp.pad(params["b_out"][None, :], ((0, 0), (0, o_pad - O)))

    # Explicit VMEM budget (double-buffered blocks + weights + scratch) with headroom;
    # kept below v7x's 64 MiB physical VMEM.
    f32 = 4
    resident = f32 * (
        2 * T * b_chunk * i_pad                                   # x block (2 bufs)
        + 2 * T * b_chunk * o_pad                                 # out block (2 bufs)
        + 4 * b_chunk * h_pad                                     # h0 + hfin blocks
        + 2 * (i_pad * h_pad + h_pad * h_pad + h_pad + h_pad * o_pad + o_pad)
        + T * b_chunk * h_pad                                     # hs scratch
    )
    vmem_limit = int(min(max(2 * resident, 16 * 1024 * 1024), 60 * 1024 * 1024))
    # TODO(synk): for large T*B switch to a time-chunked "arbitrary" grid (h and W_hh
    # in persistent scratch, x/out blocks pipelined) so VMEM stays bounded.

    kernel = functools.partial(rnn_fused_kernel, seq_len=T, b_chunk=b_chunk)

    out_p, hfin_p = pl.pallas_call(
        kernel,
        grid=(n_chunks,),
        out_shape=(
            jax.ShapeDtypeStruct((T, b_pad, o_pad), jnp.float32),
            jax.ShapeDtypeStruct((b_pad, h_pad), jnp.float32),
        ),
        in_specs=[
            pl.BlockSpec((T, b_chunk, i_pad), lambda c: (0, c, 0)),   # x (time-major)
            pl.BlockSpec((b_chunk, h_pad), lambda c: (c, 0)),         # h0
            pl.BlockSpec((i_pad, h_pad), lambda c: (0, 0)),           # W_ih^T
            pl.BlockSpec((h_pad, h_pad), lambda c: (0, 0)),           # W_hh^T
            pl.BlockSpec((1, h_pad), lambda c: (0, 0)),               # b_ih + b_hh
            pl.BlockSpec((h_pad, o_pad), lambda c: (0, 0)),           # W_out^T
            pl.BlockSpec((1, o_pad), lambda c: (0, 0)),               # b_out
        ],
        out_specs=(
            pl.BlockSpec((T, b_chunk, o_pad), lambda c: (0, c, 0)),   # head output
            pl.BlockSpec((b_chunk, h_pad), lambda c: (c, 0)),         # final hidden
        ),
        scratch_shapes=[pltpu.VMEM((T * b_chunk, h_pad), jnp.float32)],
        compiler_params=pltpu.CompilerParams(
            dimension_semantics=("parallel",),
            vmem_limit_bytes=vmem_limit,
        ),
    )(x_p, h0_p, wih_p, whh_p, bias_p, wout_p, bout_p)

    # Slice padding off and restore PyTorch batch-first flatten order (row = b*T + t).
    out = jnp.transpose(out_p[:, :B, :O], (1, 0, 2)).reshape(B * T, O)[None]
    h_state_new = hfin_p[:B, :H][None]                                # (1, B, H)
    return out, h_state_new


def reference_forward(x, h_state, params):
    """Pure-JAX reference of the PyTorch module for validation."""
    def step(h, x_t):
        h_new = jnp.tanh(x_t @ params["w_ih"].T + params["b_ih"]
                         + h @ params["w_hh"].T + params["b_hh"])
        return h_new, h_new
    x_tm = jnp.transpose(x, (1, 0, 2))
    h_fin, hs = jax.lax.scan(step, h_state[0], x_tm)
    r_out = jnp.transpose(hs, (1, 0, 2))                              # (B, T, H)
    flat = r_out.reshape(-1, params["w_hh"].shape[0])
    out = flat @ params["w_out"].T + params["b_out"]
    return out[None], h_fin[None]


def init_params(key, input_size, hidden_size, output_size):
    ks = jax.random.split(key, 6)
    s = 1.0 / jnp.sqrt(hidden_size)
    return {
        "w_ih": jax.random.uniform(ks[0], (hidden_size, input_size), jnp.float32, -s, s),
        "w_hh": jax.random.uniform(ks[1], (hidden_size, hidden_size), jnp.float32, -s, s),
        "b_ih": jax.random.uniform(ks[2], (hidden_size,), jnp.float32, -s, s),
        "b_hh": jax.random.uniform(ks[3], (hidden_size,), jnp.float32, -s, s),
        "w_out": jax.random.uniform(ks[4], (output_size, hidden_size), jnp.float32, -s, s),
        "b_out": jax.random.uniform(ks[5], (output_size,), jnp.float32, -s, s),
    }


if __name__ == "__main__":
    B, T, I, H, O = 2, 8, 16, 32, 10

    key = jax.random.PRNGKey(0)
    k_x, k_h, k_p = jax.random.split(key, 3)
    x = jax.random.normal(k_x, (B, T, I), jnp.float32)
    h_state = jax.random.normal(k_h, (1, B, H), jnp.float32)
    params = init_params(k_p, I, H, O)

    out, h_new = jax.block_until_ready(simple_rnn_forward(x, h_state, params))

    out_ref, h_ref = reference_forward(x, h_state, params)
    assert out.shape == (1, B * T, O) and h_new.shape == (1, B, H)
    assert jnp.allclose(out, out_ref, atol=1e-5, rtol=1e-5)
    assert jnp.allclose(h_new, h_ref, atol=1e-5, rtol=1e-5)

    print("KERNEL_OK")
</pallas_src>

<mosaic_0001>
module attributes {stable_mosaic.version = 11 : i64} {
  func.func @rnn_fused_kernel(%arg0: i32, %arg1: memref<8x8x128xf32, #tpu.memory_space<vmem>>, %arg2: memref<8x128xf32, #tpu.memory_space<vmem>>, %arg3: memref<128x128xf32, #tpu.memory_space<vmem>>, %arg4: memref<128x128xf32, #tpu.memory_space<vmem>>, %arg5: memref<1x128xf32, #tpu.memory_space<vmem>>, %arg6: memref<128x128xf32, #tpu.memory_space<vmem>>, %arg7: memref<1x128xf32, #tpu.memory_space<vmem>>, %arg8: memref<8x8x128xf32, #tpu.memory_space<vmem>>, %arg9: memref<8x128xf32, #tpu.memory_space<vmem>>, %arg10: memref<64x128xf32, #tpu.memory_space<vmem>>) attributes {dimension_semantics = [#tpu.dimension_semantics<parallel>], iteration_bounds = array<i64: 1>, scalar_prefetch = 0 : i64, scratch_operands = 1 : i64, tpu.core_type = #tpu.core_type<tc>, window_params = [{transform_indices = @transform_0, window_bounds = array<i64: 8, 8, 128>}, {transform_indices = @transform_1, window_bounds = array<i64: 8, 128>}, {pipeline_mode = #tpu.pipeline_mode<synchronous>, transform_indices = @transform_2, window_bounds = array<i64: 128, 128>}, {pipeline_mode = #tpu.pipeline_mode<synchronous>, transform_indices = @transform_3, window_bounds = array<i64: 128, 128>}, {pipeline_mode = #tpu.pipeline_mode<synchronous>, transform_indices = @transform_4, window_bounds = array<i64: 1, 128>}, {pipeline_mode = #tpu.pipeline_mode<synchronous>, transform_indices = @transform_5, window_bounds = array<i64: 128, 128>}, {pipeline_mode = #tpu.pipeline_mode<synchronous>, transform_indices = @transform_6, window_bounds = array<i64: 1, 128>}, {transform_indices = @transform_7, window_bounds = array<i64: 8, 8, 128>}, {transform_indices = @transform_8, window_bounds = array<i64: 8, 128>}]} {
    %c0 = arith.constant 0 : index
    %c0_0 = arith.constant 0 : index
    %c0_1 = arith.constant 0 : index
    %0 = vector.load %arg1[%c0, %c0_0, %c0_1] : memref<8x8x128xf32, #tpu.memory_space<vmem>>, vector<8x8x128xf32>
    %1 = vector.shape_cast %0 : vector<8x8x128xf32> to vector<64x128xf32>
    %c0_2 = arith.constant 0 : index
    %c0_3 = arith.constant 0 : index
    %2 = vector.load %arg3[%c0_2, %c0_3] : memref<128x128xf32, #tpu.memory_space<vmem>>, vector<128x128xf32>
    %cst = arith.constant dense<0.000000e+00> : vector<64x128xf32>
    %3 = tpu.matmul %1, %2, %cst {dimension_numbers = #tpu.dot_dimension_numbers<[1], [0], [0], [1], [0, 0, 1, 1], [], []>} : vector<64x128xf32>, vector<128x128xf32>, vector<64x128xf32> -> vector<64x128xf32>
    %c0_4 = arith.constant 0 : index
    %c0_5 = arith.constant 0 : index
    %4 = vector.load %arg5[%c0_4, %c0_5] : memref<1x128xf32, #tpu.memory_space<vmem>>, vector<1x128xf32>
    %5 = vector.broadcast %4 : vector<1x128xf32> to vector<64x128xf32>
    %6 = arith.addf %3, %5 : vector<64x128xf32>
    %c0_6 = arith.constant 0 : index
    %c0_7 = arith.constant 0 : index
    %7 = vector.load %arg10[%c0_6, %c0_7] : memref<64x128xf32, #tpu.memory_space<vmem>>, vector<64x128xf32>
    tpu.vector_store %arg10[%c0_6, %c0_7], %6 {strides = array<i32>} : memref<64x128xf32, #tpu.memory_space<vmem>>, vector<64x128xf32>,
    %c0_8 = arith.constant 0 : index
    %c0_9 = arith.constant 0 : index
    %8 = vector.load %arg4[%c0_8, %c0_9] : memref<128x128xf32, #tpu.memory_space<vmem>>, vector<128x128xf32>
    %c0_10 = arith.constant 0 : index
    %c0_11 = arith.constant 0 : index
    %9 = vector.load %arg2[%c0_10, %c0_11] : memref<8x128xf32, #tpu.memory_space<vmem>>, vector<8x128xf32>
    %c0_i32 = arith.constant 0 : i32
    %c8_i32 = arith.constant 8 : i32
    %10 = arith.muli %c0_i32, %c8_i32 : i32
    %11 = tpu.assume_multiple %10, 8 : i32
    %12 = arith.index_cast %11 : i32 to index
    %c0_12 = arith.constant 0 : index
    %13 = vector.load %arg10[%12, %c0_12] : memref<64x128xf32, #tpu.memory_space<vmem>>, vector<8x128xf32>
    %cst_13 = arith.constant dense<0.000000e+00> : vector<8x128xf32>
    %14 = tpu.matmul %9, %8, %cst_13 {dimension_numbers = #tpu.dot_dimension_numbers<[1], [0], [0], [1], [0, 0, 1, 1], [], []>} : vector<8x128xf32>, vector<128x128xf32>, vector<8x128xf32> -> vector<8x128xf32>
    %15 = arith.addf %13, %14 : vector<8x128xf32>
    %16 = math.tanh %15 : vector<8x128xf32>
    %17 = arith.index_cast %11 : i32 to index
    %c0_14 = arith.constant 0 : index
    %18 = vector.load %arg10[%17, %c0_14] : memref<64x128xf32, #tpu.memory_space<vmem>>, vector<8x128xf32>
    tpu.vector_store %arg10[%17, %c0_14], %16 {strides = array<i32>} : memref<64x128xf32, #tpu.memory_space<vmem>>, vector<8x128xf32>,
    %c1_i32 = arith.constant 1 : i32
    %c8_i32_15 = arith.constant 8 : i32
    %19 = arith.muli %c1_i32, %c8_i32_15 : i32
    %20 = tpu.assume_multiple %19, 8 : i32
    %21 = arith.index_cast %20 : i32 to index
    %c0_16 = arith.constant 0 : index
    %22 = vector.load %arg10[%21, %c0_16] : memref<64x128xf32, #tpu.memory_space<vmem>>, vector<8x128xf32>
    %cst_17 = arith.constant dense<0.000000e+00> : vector<8x128xf32>
    %23 = tpu.matmul %16, %8, %cst_17 {dimension_numbers = #tpu.dot_dimension_numbers<[1], [0], [0], [1], [0, 0, 1, 1], [], []>} : vector<8x128xf32>, vector<128x128xf32>, vector<8x128xf32> -> vector<8x128xf32>
    %24 = arith.addf %22, %23 : vector<8x128xf32>
    %25 = math.tanh %24 : vector<8x128xf32>
    %26 = arith.index_cast %20 : i32 to index
    %c0_18 = arith.constant 0 : index
    %27 = vector.load %arg10[%26, %c0_18] : memref<64x128xf32, #tpu.memory_space<vmem>>, vector<8x128xf32>
    tpu.vector_store %arg10[%26, %c0_18], %25 {strides = array<i32>} : memref<64x128xf32, #tpu.memory_space<vmem>>, vector<8x128xf32>,
    %c2_i32 = arith.constant 2 : i32
    %c8_i32_19 = arith.constant 8 : i32
    %28 = arith.muli %c2_i32, %c8_i32_19 : i32
    %29 = tpu.assume_multiple %28, 8 : i32
    %30 = arith.index_cast %29 : i32 to index
    %c0_20 = arith.constant 0 : index
    %31 = vector.load %arg10[%30, %c0_20] : memref<64x128xf32, #tpu.memory_space<vmem>>, vector<8x128xf32>
    %cst_21 = arith.constant dense<0.000000e+00> : vector<8x128xf32>
    %32 = tpu.matmul %25, %8, %cst_21 {dimension_numbers = #tpu.dot_dimension_numbers<[1], [0], [0], [1], [0, 0, 1, 1], [], []>} : vector<8x128xf32>, vector<128x128xf32>, vector<8x128xf32> -> vector<8x128xf32>
    %33 = arith.addf %31, %32 : vector<8x128xf32>
    %34 = math.tanh %33 : vector<8x128xf32>
    %35 = arith.index_cast %29 : i32 to index
    %c0_22 = arith.constant 0 : index
    %36 = vector.load %arg10[%35, %c0_22] : memref<64x128xf32, #tpu.memory_space<vmem>>, vector<8x128xf32>
    tpu.vector_store %arg10[%35, %c0_22], %34 {strides = array<i32>} : memref<64x128xf32, #tpu.memory_space<vmem>>, vector<8x128xf32>,
    %c3_i32 = arith.constant 3 : i32
    %c8_i32_23 = arith.constant 8 : i32
    %37 = arith.muli %c3_i32, %c8_i32_23 : i32
    %38 = tpu.assume_multiple %37, 8 : i32
    %39 = arith.index_cast %38 : i32 to index
    %c0_24 = arith.constant 0 : index
    %40 = vector.load %arg10[%39, %c0_24] : memref<64x128xf32, #tpu.memory_space<vmem>>, vector<8x128xf32>
    %cst_25 = arith.constant dense<0.000000e+00> : vector<8x128xf32>
    %41 = tpu.matmul %34, %8, %cst_25 {dimension_numbers = #tpu.dot_dimension_numbers<[1], [0], [0], [1], [0, 0, 1, 1], [], []>} : vector<8x128xf32>, vector<128x128xf32>, vector<8x128xf32> -> vector<8x128xf32>
    %42 = arith.addf %40, %41 : vector<8x128xf32>
    %43 = math.tanh %42 : vector<8x128xf32>
    %44 = arith.index_cast %38 : i32 to index
    %c0_26 = arith.constant 0 : index
    %45 = vector.load %arg10[%44, %c0_26] : memref<64x128xf32, #tpu.memory_space<vmem>>, vector<8x128xf32>
    tpu.vector_store %arg10[%44, %c0_26], %43 {strides = array<i32>} : memref<64x128xf32, #tpu.memory_space<vmem>>, vector<8x128xf32>,
    %c4_i32 = arith.constant 4 : i32
    %c8_i32_27 = arith.constant 8 : i32
    %46 = arith.muli %c4_i32, %c8_i32_27 : i32
    %47 = tpu.assume_multiple %46, 8 : i32
    %48 = arith.index_cast %47 : i32 to index
    %c0_28 = arith.constant 0 : index
    %49 = vector.load %arg10[%48, %c0_28] : memref<64x128xf32, #tpu.memory_space<vmem>>, vector<8x128xf32>
    %cst_29 = arith.constant dense<0.000000e+00> : vector<8x128xf32>
    %50 = tpu.matmul %43, %8, %cst_29 {dimension_numbers = #tpu.dot_dimension_numbers<[1], [0], [0], [1], [0, 0, 1, 1], [], []>} : vector<8x128xf32>, vector<128x128xf32>, vector<8x128xf32> -> vector<8x128xf32>
    %51 = arith.addf %49, %50 : vector<8x128xf32>
    %52 = math.tanh %51 : vector<8x128xf32>
    %53 = arith.index_cast %47 : i32 to index
    %c0_30 = arith.constant 0 : index
    %54 = vector.load %arg10[%53, %c0_30] : memref<64x128xf32, #tpu.memory_space<vmem>>, vector<8x128xf32>
    tpu.vector_store %arg10[%53, %c0_30], %52 {strides = array<i32>} : memref<64x128xf32, #tpu.memory_space<vmem>>, vector<8x128xf32>,
    %c5_i32 = arith.constant 5 : i32
    %c8_i32_31 = arith.constant 8 : i32
    %55 = arith.muli %c5_i32, %c8_i32_31 : i32
    %56 = tpu.assume_multiple %55, 8 : i32
    %57 = arith.index_cast %56 : i32 to index
    %c0_32 = arith.constant 0 : index
    %58 = vector.load %arg10[%57, %c0_32] : memref<64x128xf32, #tpu.memory_space<vmem>>, vector<8x128xf32>
    %cst_33 = arith.constant dense<0.000000e+00> : vector<8x128xf32>
    %59 = tpu.matmul %52, %8, %cst_33 {dimension_numbers = #tpu.dot_dimension_numbers<[1], [0], [0], [1], [0, 0, 1, 1], [], []>} : vector<8x128xf32>, vector<128x128xf32>, vector<8x128xf32> -> vector<8x128xf32>
    %60 = arith.addf %58, %59 : vector<8x128xf32>
    %61 = math.tanh %60 : vector<8x128xf32>
    %62 = arith.index_cast %56 : i32 to index
    %c0_34 = arith.constant 0 : index
    %63 = vector.load %arg10[%62, %c0_34] : memref<64x128xf32, #tpu.memory_space<vmem>>, vector<8x128xf32>
    tpu.vector_store %arg10[%62, %c0_34], %61 {strides = array<i32>} : memref<64x128xf32, #tpu.memory_space<vmem>>, vector<8x128xf32>,
    %c6_i32 = arith.constant 6 : i32
    %c8_i32_35 = arith.constant 8 : i32
    %64 = arith.muli %c6_i32, %c8_i32_35 : i32
    %65 = tpu.assume_multiple %64, 8 : i32
    %66 = arith.index_cast %65 : i32 to index
    %c0_36 = arith.constant 0 : index
    %67 = vector.load %arg10[%66, %c0_36] : memref<64x128xf32, #tpu.memory_space<vmem>>, vector<8x128xf32>
    %cst_37 = arith.constant dense<0.000000e+00> : vector<8x128xf32>
    %68 = tpu.matmul %61, %8, %cst_37 {dimension_numbers = #tpu.dot_dimension_numbers<[1], [0], [0], [1], [0, 0, 1, 1], [], []>} : vector<8x128xf32>, vector<128x128xf32>, vector<8x128xf32> -> vector<8x128xf32>
    %69 = arith.addf %67, %68 : vector<8x128xf32>
    %70 = math.tanh %69 : vector<8x128xf32>
    %71 = arith.index_cast %65 : i32 to index
    %c0_38 = arith.constant 0 : index
    %72 = vector.load %arg10[%71, %c0_38] : memref<64x128xf32, #tpu.memory_space<vmem>>, vector<8x128xf32>
    tpu.vector_store %arg10[%71, %c0_38], %70 {strides = array<i32>} : memref<64x128xf32, #tpu.memory_space<vmem>>, vector<8x128xf32>,
    %c7_i32 = arith.constant 7 : i32
    %c8_i32_39 = arith.constant 8 : i32
    %73 = arith.muli %c7_i32, %c8_i32_39 : i32
    %74 = tpu.assume_multiple %73, 8 : i32
    %75 = arith.index_cast %74 : i32 to index
    %c0_40 = arith.constant 0 : index
    %76 = vector.load %arg10[%75, %c0_40] : memref<64x128xf32, #tpu.memory_space<vmem>>, vector<8x128xf32>
    %cst_41 = arith.constant dense<0.000000e+00> : vector<8x128xf32>
    %77 = tpu.matmul %70, %8, %cst_41 {dimension_numbers = #tpu.dot_dimension_numbers<[1], [0], [0], [1], [0, 0, 1, 1], [], []>} : vector<8x128xf32>, vector<128x128xf32>, vector<8x128xf32> -> vector<8x128xf32>
    %78 = arith.addf %76, %77 : vector<8x128xf32>
    %79 = math.tanh %78 : vector<8x128xf32>
    %80 = arith.index_cast %74 : i32 to index
    %c0_42 = arith.constant 0 : index
    %81 = vector.load %arg10[%80, %c0_42] : memref<64x128xf32, #tpu.memory_space<vmem>>, vector<8x128xf32>
    tpu.vector_store %arg10[%80, %c0_42], %79 {strides = array<i32>} : memref<64x128xf32, #tpu.memory_space<vmem>>, vector<8x128xf32>,
    %c8_i32_43 = arith.constant 8 : i32
    %c0_44 = arith.constant 0 : index
    %c0_45 = arith.constant 0 : index
    %82 = vector.load %arg9[%c0_44, %c0_45] : memref<8x128xf32, #tpu.memory_space<vmem>>, vector<8x128xf32>
    tpu.vector_store %arg9[%c0_44, %c0_45], %79 {strides = array<i32>} : memref<8x128xf32, #tpu.memory_space<vmem>>, vector<8x128xf32>,
    %c0_46 = arith.constant 0 : index
    %c0_47 = arith.constant 0 : index
    %83 = vector.load %arg10[%c0_46, %c0_47] : memref<64x128xf32, #tpu.memory_space<vmem>>, vector<64x128xf32>
    %c0_48 = arith.constant 0 : index
    %c0_49 = arith.constant 0 : index
    %84 = vector.load %arg6[%c0_48, %c0_49] : memref<128x128xf32, #tpu.memory_space<vmem>>, vector<128x128xf32>
    %cst_50 = arith.constant dense<0.000000e+00> : vector<64x128xf32>
    %85 = tpu.matmul %83, %84, %cst_50 {dimension_numbers = #tpu.dot_dimension_numbers<[1], [0], [0], [1], [0, 0, 1, 1], [], []>} : vector<64x128xf32>, vector<128x128xf32>, vector<64x128xf32> -> vector<64x128xf32>
    %c0_51 = arith.constant 0 : index
    %c0_52 = arith.constant 0 : index
    %86 = vector.load %arg7[%c0_51, %c0_52] : memref<1x128xf32, #tpu.memory_space<vmem>>, vector<1x128xf32>
    %87 = vector.broadcast %86 : vector<1x128xf32> to vector<64x128xf32>
    %88 = arith.addf %85, %87 : vector<64x128xf32>
    %89 = vector.shape_cast %88 : vector<64x128xf32> to vector<8x8x128xf32>
    %c0_53 = arith.constant 0 : index
    %c0_54 = arith.constant 0 : index
    %c0_55 = arith.constant 0 : index
    %90 = vector.load %arg8[%c0_53, %c0_54, %c0_55] : memref<8x8x128xf32, #tpu.memory_space<vmem>>, vector<8x8x128xf32>
    tpu.vector_store %arg8[%c0_53, %c0_54, %c0_55], %89 {strides = array<i32>} : memref<8x8x128xf32, #tpu.memory_space<vmem>>, vector<8x8x128xf32>,
    return
  }
  func.func @transform_0(%arg0: i32) -> (i32, i32, i32) {
    %c0_i32 = arith.constant 0 : i32
    %c0_i32_0 = arith.constant 0 : i32
    %c0_i32_1 = arith.constant 0 : i32
    return %c0_i32, %arg0, %c0_i32_0 : i32, i32, i32
  }
  func.func @transform_1(%arg0: i32) -> (i32, i32) {
    %c0_i32 = arith.constant 0 : i32
    %c0_i32_0 = arith.constant 0 : i32
    return %arg0, %c0_i32 : i32, i32
  }
  func.func @transform_2(%arg0: i32) -> (i32, i32) {
    %c0_i32 = arith.constant 0 : i32
    %c0_i32_0 = arith.constant 0 : i32
    %c0_i32_1 = arith.constant 0 : i32
    return %c0_i32, %c0_i32_0 : i32, i32
  }
  func.func @transform_3(%arg0: i32) -> (i32, i32) {
    %c0_i32 = arith.constant 0 : i32
    %c0_i32_0 = arith.constant 0 : i32
    %c0_i32_1 = arith.constant 0 : i32
    return %c0_i32, %c0_i32_0 : i32, i32
  }
  func.func @transform_4(%arg0: i32) -> (i32, i32) {
    %c0_i32 = arith.constant 0 : i32
    %c0_i32_0 = arith.constant 0 : i32
    %c0_i32_1 = arith.constant 0 : i32
    return %c0_i32, %c0_i32_0 : i32, i32
  }
  func.func @transform_5(%arg0: i32) -> (i32, i32) {
    %c0_i32 = arith.constant 0 : i32
    %c0_i32_0 = arith.constant 0 : i32
    %c0_i32_1 = arith.constant 0 : i32
    return %c0_i32, %c0_i32_0 : i32, i32
  }
  func.func @transform_6(%arg0: i32) -> (i32, i32) {
    %c0_i32 = arith.constant 0 : i32
    %c0_i32_0 = arith.constant 0 : i32
    %c0_i32_1 = arith.constant 0 : i32
    return %c0_i32, %c0_i32_0 : i32, i32
  }
  func.func @transform_7(%arg0: i32) -> (i32, i32, i32) {
    %c0_i32 = arith.constant 0 : i32
    %c0_i32_0 = arith.constant 0 : i32
    %c0_i32_1 = arith.constant 0 : i32
    return %c0_i32, %arg0, %c0_i32_0 : i32, i32, i32
  }
  func.func @transform_8(%arg0: i32) -> (i32, i32) {
    %c0_i32 = arith.constant 0 : i32
    %c0_i32_0 = arith.constant 0 : i32
    return %arg0, %c0_i32 : i32, i32
  }
}

</mosaic_0001>

<llo_original>
// kernel: tpu_custom_call.1
$region0: #{tpu_custom_call.1}
  #allocation0 [shape = 'u32[]', space=smem, size = 0x4, offset = 0x4, fixed_abs, tag = 'smem constant byte address 0x4 - core index']
  #allocation1 [shape = 'u32[144,128]{1,0:T(1,128)}', space=vmem, size = 0x12000, scoped, tag = 'internal scratch']
  #allocation2 [shape = 'f32[64,128]{1,0:T(8,128)}', space=vmem, size = 0x8000, scoped, tag = 'scratch operand']
  %s0 = inlined_call_operand.hbm [shape: f32[8,8,128], index: 0, kind: input, shape index: {}]
  %s1 = inlined_call_operand.hbm [shape: f32[8,128], index: 1, kind: input, shape index: {}]
  %s2 = inlined_call_operand.hbm [shape: f32[128,128], index: 2, kind: input, shape index: {}]
  %s3 = inlined_call_operand.hbm [shape: f32[128,128], index: 3, kind: input, shape index: {}]
  %s4 = inlined_call_operand.vmem [shape: f32[1,128], index: 4, kind: input, shape index: {}]
  %s5 = inlined_call_operand.hbm [shape: f32[128,128], index: 5, kind: input, shape index: {}]
  %s6 = inlined_call_operand.vmem [shape: f32[1,128], index: 6, kind: input, shape index: {}]
  %s7 = inlined_call_operand.hbm [shape: f32[8,8,128], index: 7, kind: output, shape index: {0}]
  %s8 = inlined_call_operand.hbm [shape: f32[8,128], index: 8, kind: output, shape index: {1}]
  %9 = xla_tuple %s7, %s8
  %s10 = sld [smem:[#allocation0]]
  $region66: #{tpu_custom_call.1} parent=0
    _
  %s12 = ssub.s32 1, %s10
  %s13 = scalar_select 0, %s12, %s10
  $region1: #{tpu_custom_call.1} parent=0
    #allocation3 [shape = 'u8[32768]{0}', space=vmem, size = 0x8000, scoped, tag = 'input window, operand 0, single buffered']
    #allocation4 [shape = 's32[1]{0}', space=sflag, size = 0x4, scoped, tag = 'scoped memory for tpu_custom_call.1']
    #allocation5 [shape = 's32[1]{0}', space=sflag, size = 0x4, scoped, tag = 'scoped memory for tpu_custom_call.1']
    #allocation6 [shape = 'u8[4096]{0}', space=vmem, size = 0x1000, scoped, tag = 'input window, operand 1, single buffered']
    #allocation7 [shape = 's32[1]{0}', space=sflag, size = 0x4, scoped, tag = 'scoped memory for tpu_custom_call.1']
    #allocation8 [shape = 'u8[65536]{0}', space=vmem, size = 0x10000, scoped, tag = 'input window, operand 2, single buffered']
    #allocation9 [shape = 'u8[65536]{0}', space=vmem, size = 0x10000, scoped, tag = 'input window, operand 3, single buffered']
    #allocation10 [shape = 's32[1]{0}', space=sflag, size = 0x4, scoped, tag = 'scoped memory for tpu_custom_call.1']
    #allocation11 [shape = 'u8[65536]{0}', space=vmem, size = 0x10000, scoped, tag = 'input window, operand 5, single buffered']
    #allocation12 [shape = 'u8[32768]{0}', space=vmem, size = 0x8000, scoped, tag = 'output window, operand 0, single buffered']
    #allocation13 [shape = 'u8[4096]{0}', space=vmem, size = 0x1000, scoped, tag = 'output window, operand 1, single buffered']
    #allocation14 [shape = 's32[1]{0}', space=sflag, size = 0x4, scoped, tag = 'scoped memory for tpu_custom_call.1']
    %14 = vsyncpa [#allocation4], 0
    %15 = vsyncpa [#allocation7], 0
    %16 = vsyncpa [#allocation10], 0
    %17 = vsyncpa [#allocation5], 0
    %18 = vsyncpa [#allocation14], 0
    // Predicated region
    $region2: #{tpu_custom_call.1} parent=1 // pred_check
      _
    $region3: #{tpu_custom_call.1} parent=1 // pred_check_branch
      %20 = sbr.rel (0) target = $region5
    $region4: #{tpu_custom_call.1} parent=1 // pred_region
      %s22 = ssub.s32 1024, 1024
      %23 = vsyncadd [#allocation4], %s22
      %s24 = sshll.u32 [#allocation3], 4
      %s25 = int_to_ptr.vmem [resolvable:$true] %s24
      %30 = dma.hbm_to_vmem [thread:$0]  %s0, 1024, %s25, [#allocation4], 128, 128, 8
    $region5: #{tpu_custom_call.1} parent=1 // pred_fallthru
      _
    // Predicated region
    $region6: #{tpu_custom_call.1} parent=1 // pred_check
      _
    $region7: #{tpu_custom_call.1} parent=1 // pred_check_branch
      %32 = sbr.rel (0) target = $region9
    $region8: #{tpu_custom_call.1} parent=1 // pred_region
      %s34 = ssub.s32 128, 128
      %35 = vsyncadd [#allocation7], %s34
      %s37 = sshll.u32 [#allocation6], 4
      %s38 = int_to_ptr.vmem [resolvable:$true] %s37
      %40 = dma.hbm_to_vmem [thread:$0]  %s1, 128, %s38, [#allocation7]
    $region9: #{tpu_custom_call.1} parent=1 // pred_fallthru
      _
    // Predicated region
    $region10: #{tpu_custom_call.1} parent=1 // pred_check
      _
    $region11: #{tpu_custom_call.1} parent=1 // pred_check_branch
      %42 = sbr.rel (0) target = $region13
    $region12: #{tpu_custom_call.1} parent=1 // pred_region
      %s44 = ssub.s32 2048, 2048
      %45 = vsyncadd [#allocation7], %s44
      %s46 = sshll.u32 [#allocation8], 4
      %s47 = int_to_ptr.vmem [resolvable:$true] %s46
      %52 = dma.hbm_to_vmem [thread:$0]  %s2, 2048, %s47, [#allocation7], 128, 128, 8
    $region13: #{tpu_custom_call.1} parent=1 // pred_fallthru
      _
    // Predicated region
    $region14: #{tpu_custom_call.1} parent=1 // pred_check
      _
    $region15: #{tpu_custom_call.1} parent=1 // pred_check_branch
      %54 = sbr.rel (0) target = $region17
    $region16: #{tpu_custom_call.1} parent=1 // pred_region
      %s56 = ssub.s32 2048, 2048
      %57 = vsyncadd [#allocation10], %s56
      %s58 = sshll.u32 [#allocation9], 4
      %s59 = int_to_ptr.vmem [resolvable:$true] %s58
      %64 = dma.hbm_to_vmem [thread:$0]  %s3, 2048, %s59, [#allocation10], 128, 128, 8
    $region17: #{tpu_custom_call.1} parent=1 // pred_fallthru
      _
    // Predicated region
    $region18: #{tpu_custom_call.1} parent=1 // pred_check
      _
    $region19: #{tpu_custom_call.1} parent=1 // pred_check_branch
      %66 = sbr.rel (0) target = $region21
    $region20: #{tpu_custom_call.1} parent=1 // pred_region
      _
    $region21: #{tpu_custom_call.1} parent=1 // pred_fallthru
      _
    // Predicated region
    $region22: #{tpu_custom_call.1} parent=1 // pred_check
      _
    $region23: #{tpu_custom_call.1} parent=1 // pred_check_branch
      %68 = sbr.rel (0) target = $region25
    $region24: #{tpu_custom_call.1} parent=1 // pred_region
      %s70 = ssub.s32 2048, 2048
      %71 = vsyncadd [#allocation10], %s70
      %s72 = sshll.u32 [#allocation11], 4
      %s73 = int_to_ptr.vmem [resolvable:$true] %s72
      %78 = dma.hbm_to_vmem [thread:$0]  %s5, 2048, %s73, [#allocation10], 128, 128, 8
    $region25: #{tpu_custom_call.1} parent=1 // pred_fallthru
      _
    // Predicated region
    $region26: #{tpu_custom_call.1} parent=1 // pred_check
      _
    $region27: #{tpu_custom_call.1} parent=1 // pred_check_branch
      %80 = sbr.rel (0) target = $region29
    $region28: #{tpu_custom_call.1} parent=1 // pred_region
      _
    $region29: #{tpu_custom_call.1} parent=1 // pred_fallthru
      _
    // Predicated region
    $region30: #{tpu_custom_call.1} parent=1 // pred_check
      _
    $region31: #{tpu_custom_call.1} parent=1 // pred_check_branch
      %82 = sbr.rel (0) target = $region33
    $region32: #{tpu_custom_call.1} parent=1 // pred_region
      %83 = dma.done [#allocation4], 1024
    $region33: #{tpu_custom_call.1} parent=1 // pred_fallthru
      _
    // Predicated region
    $region34: #{tpu_custom_call.1} parent=1 // pred_check
      _
    $region35: #{tpu_custom_call.1} parent=1 // pred_check_branch
      %85 = sbr.rel (0) target = $region37
    $region36: #{tpu_custom_call.1} parent=1 // pred_region
      %86 = dma.done [#allocation7], 128
    $region37: #{tpu_custom_call.1} parent=1 // pred_fallthru
      _
    // Predicated region
    $region38: #{tpu_custom_call.1} parent=1 // pred_check
      _
    $region39: #{tpu_custom_call.1} parent=1 // pred_check_branch
      %88 = sbr.rel (0) target = $region41
    $region40: #{tpu_custom_call.1} parent=1 // pred_region
      %89 = dma.done [#allocation7], 2048
    $region41: #{tpu_custom_call.1} parent=1 // pred_fallthru
      _
    // Predicated region
    $region42: #{tpu_custom_call.1} parent=1 // pred_check
      _
    $region43: #{tpu_custom_call.1} parent=1 // pred_check_branch
      %91 = sbr.rel (0) target = $region45
    $region44: #{tpu_custom_call.1} parent=1 // pred_region
      %92 = dma.done [#allocation10], 2048
    $region45: #{tpu_custom_call.1} parent=1 // pred_fallthru
      _
    // Predicated region
    $region46: #{tpu_custom_call.1} parent=1 // pred_check
      _
    $region47: #{tpu_custom_call.1} parent=1 // pred_check_branch
      %94 = sbr.rel (0) target = $region49
    $region48: #{tpu_custom_call.1} parent=1 // pred_region
      %95 = dma.done [#allocation10], 2048
    $region49: #{tpu_custom_call.1} parent=1 // pred_fallthru
      _
    %v96 = vld [vmem:[#allocation3] sm:$0xff]
    %v97 = vld [vmem:[#allocation3 + $0x8] sm:$0xff]
    %v98 = vld [vmem:[#allocation3 + $0x10] sm:$0xff]
    %v99 = vld [vmem:[#allocation3 + $0x18] sm:$0xff]
    %v100 = vld [vmem:[#allocation3 + $0x20] sm:$0xff]
    %v101 = vld [vmem:[#allocation3 + $0x28] sm:$0xff]
    %v102 = vld [vmem:[#allocation3 + $0x30] sm:$0xff]
    %v103 = vld [vmem:[#allocation3 + $0x38] sm:$0xff]
    %v104 = vld [vmem:[#allocation8] sm:$0xff]
    %v105 = vld [vmem:[#allocation8 + $0x8] sm:$0xff]
    %v106 = vld [vmem:[#allocation8 + $0x10] sm:$0xff]
    %v107 = vld [vmem:[#allocation8 + $0x18] sm:$0xff]
    %v108 = vld [vmem:[#allocation8 + $0x20] sm:$0xff]
    %v109 = vld [vmem:[#allocation8 + $0x28] sm:$0xff]
    %v110 = vld [vmem:[#allocation8 + $0x30] sm:$0xff]
    %v111 = vld [vmem:[#allocation8 + $0x38] sm:$0xff]
    %v112 = vld [vmem:[#allocation8 + $0x40] sm:$0xff]
    %v113 = vld [vmem:[#allocation8 + $0x48] sm:$0xff]
    %v114 = vld [vmem:[#allocation8 + $0x50] sm:$0xff]
    %v115 = vld [vmem:[#allocation8 + $0x58] sm:$0xff]
    %v116 = vld [vmem:[#allocation8 + $0x60] sm:$0xff]
    %v117 = vld [vmem:[#allocation8 + $0x68] sm:$0xff]
    %v118 = vld [vmem:[#allocation8 + $0x70] sm:$0xff]
    %v119 = vld [vmem:[#allocation8 + $0x78] sm:$0xff]
    %v120 = vld [vmem:[%s4] sm:$0x1]
    %v122 = vlaneseq
    %v123 = vshrl.u32 %v122, 7
    %v124 = vsub.s32 0, %v123
    %v125 = vrot.slane %v120, %v124
    %127 = vmatprep.subr.mxu0 0.0
    %128 = vmatpush1.msra.mxu0 %v104
    %129 = vmatprep.subr.mxu0 0.0
    %130 = vmatpush1.msra.mxu0 %v105
    %131 = vmatprep.subr.mxu0 0.0
    %132 = vmatpush1.msra.mxu0 %v106
    %133 = vmatprep.subr.mxu0 0.0
    %134 = vmatpush1.msra.mxu0 %v107
    %135 = vmatprep.subr.mxu0 0.0
    %136 = vmatpush1.msra.mxu0 %v108
    %137 = vmatprep.subr.mxu0 0.0
    %138 = vmatpush1.msra.mxu0 %v109
    %139 = vmatprep.subr.mxu0 0.0
    %140 = vmatpush1.msra.mxu0 %v110
    %141 = vmatprep.subr.mxu0 0.0
    %142 = vmatpush1.msra.mxu0 %v111
    %143 = vmatprep.subr.mxu0 0.0
    %144 = vmatpush1.msra.mxu0 %v112
    %145 = vmatprep.subr.mxu0 0.0
    %146 = vmatpush1.msra.mxu0 %v113
    %147 = vmatprep.subr.mxu0 0.0
    %148 = vmatpush1.msra.mxu0 %v114
    %149 = vmatprep.subr.mxu0 0.0
    %150 = vmatpush1.msra.mxu0 %v115
    %151 = vmatprep.subr.mxu0 0.0
    %152 = vmatpush1.msra.mxu0 %v116
    %153 = vmatprep.subr.mxu0 0.0
    %154 = vmatpush1.msra.mxu0 %v117
    %155 = vmatprep.subr.mxu0 0.0
    %156 = vmatpush1.msra.mxu0 %v118
    %157 = vmatprep.subr.mxu0 0.0
    %158 = vmatpush1.msra.mxu0 %v119
    %159 = vmatprep.subr.mxu0 0.0
    %160 = vmatpush1.msra.mxu0 0.0
    %161 = vmatprep.subr.mxu0 0.0
    %162 = vmatpush1.msra.mxu0 0.0
    %163 = vmatprep.subr.mxu0 0.0
    %164 = vmatpush1.msra.mxu0 0.0
    %165 = vmatprep.subr.mxu0 0.0
    %166 = vmatpush1.msra.mxu0 0.0
    %167 = vmatprep.subr.mxu0 0.0
    %168 = vmatpush1.msra.mxu0 0.0
    %169 = vmatprep.subr.mxu0 0.0
    %170 = vmatpush1.msra.mxu0 0.0
    %171 = vmatprep.subr.mxu0 0.0
    %172 = vmatpush1.msra.mxu0 0.0
    %173 = vmatprep.subr.mxu0 0.0
    %174 = vmatpush1.msra.mxu0 0.0
    %175 = vmatprep.subr.mxu0 0.0
    %176 = vmatpush1.msra.mxu0 0.0
    %177 = vmatprep.subr.mxu0 0.0
    %178 = vmatpush1.msra.mxu0 0.0
    %179 = vmatprep.subr.mxu0 0.0
    %180 = vmatpush1.msra.mxu0 0.0
    %181 = vmatprep.subr.mxu0 0.0
    %182 = vmatpush1.msra.mxu0 0.0
    %183 = vmatprep.subr.mxu0 0.0
    %184 = vmatpush1.msra.mxu0 0.0
    %185 = vmatprep.subr.mxu0 0.0
    %186 = vmatpush1.msra.mxu0 0.0
    %187 = vmatprep.subr.mxu0 0.0
    %188 = vmatpush1.msra.mxu0 0.0
    %189 = vmatprep.subr.mxu0 0.0
    %190 = vmatpush1.msra.mxu0 0.0
    %191 = vmatprep.mubr.f32.mxu0 0.0
    %192 = vmatmul.mubr.f32.gmra.mrb[0].mxu0 %v96
    %v193 = vpop.f32.mrb[0].mxu0
    %v194 = vadd.f32 %v125, %v193
    %v195 = vpop.f32.mrb[0].mxu0
    %196 = vmatprep.mubr.f32.mxu0 0.0
    %197 = vmatmul.mubr.f32.gmra.mrb[0].mxu0 %v97
    %v198 = vpop.f32.mrb[0].mxu0
    %v199 = vadd.f32 %v125, %v198
    %v200 = vpop.f32.mrb[0].mxu0
    %201 = vmatprep.mubr.f32.mxu0 0.0
    %202 = vmatmul.mubr.f32.gmra.mrb[0].mxu0 %v98
    %v203 = vpop.f32.mrb[0].mxu0
    %v204 = vadd.f32 %v125, %v203
    %v205 = vpop.f32.mrb[0].mxu0
    %206 = vmatprep.mubr.f32.mxu0 0.0
    %207 = vmatmul.mubr.f32.gmra.mrb[0].mxu0 %v99
    %v208 = vpop.f32.mrb[0].mxu0
    %v209 = vadd.f32 %v125, %v208
    %v210 = vpop.f32.mrb[0].mxu0
    %211 = vmatprep.mubr.f32.mxu0 0.0
    %212 = vmatmul.mubr.f32.gmra.mrb[0].mxu0 %v100
    %v213 = vpop.f32.mrb[0].mxu0
    %v214 = vadd.f32 %v125, %v213
    %v215 = vpop.f32.mrb[0].mxu0
    %216 = vmatprep.mubr.f32.mxu0 0.0
    %217 = vmatmul.mubr.f32.gmra.mrb[0].mxu0 %v101
    %v218 = vpop.f32.mrb[0].mxu0
    %v219 = vadd.f32 %v125, %v218
    %v220 = vpop.f32.mrb[0].mxu0
    %221 = vmatprep.mubr.f32.mxu0 0.0
    %222 = vmatmul.mubr.f32.gmra.mrb[0].mxu0 %v102
    %v223 = vpop.f32.mrb[0].mxu0
    %v224 = vadd.f32 %v125, %v223
    %v225 = vpop.f32.mrb[0].mxu0
    %226 = vmatprep.mubr.f32.mxu0 0.0
    %227 = vmatmul.mubr.f32.gmra.mrb[0].mxu0 %v103
    %v228 = vpop.f32.mrb[0].mxu0
    %v229 = vadd.f32 %v125, %v228
    %v230 = vpop.f32.mrb[0].mxu0
    %231 = vdwg.mxu0
    %232 = vst [vmem:[#allocation2] sm:$0xff] %v194
    %233 = vst [vmem:[#allocation2 + $0x8] sm:$0xff] %v199
    %234 = vst [vmem:[#allocation2 + $0x10] sm:$0xff] %v204
    %235 = vst [vmem:[#allocation2 + $0x18] sm:$0xff] %v209
    %236 = vst [vmem:[#allocation2 + $0x20] sm:$0xff] %v214
    %237 = vst [vmem:[#allocation2 + $0x28] sm:$0xff] %v219
    %238 = vst [vmem:[#allocation2 + $0x30] sm:$0xff] %v224
    %239 = vst [vmem:[#allocation2 + $0x38] sm:$0xff] %v229
    %v240 = vld [vmem:[#allocation9] sm:$0xff]
    %v241 = vld [vmem:[#allocation9 + $0x8] sm:$0xff]
    %v242 = vld [vmem:[#allocation9 + $0x10] sm:$0xff]
    %v243 = vld [vmem:[#allocation9 + $0x18] sm:$0xff]
    %v244 = vld [vmem:[#allocation9 + $0x20] sm:$0xff]
    %v245 = vld [vmem:[#allocation9 + $0x28] sm:$0xff]
    %v246 = vld [vmem:[#allocation9 + $0x30] sm:$0xff]
    %v247 = vld [vmem:[#allocation9 + $0x38] sm:$0xff]
    %v248 = vld [vmem:[#allocation9 + $0x40] sm:$0xff]
    %v249 = vld [vmem:[#allocation9 + $0x48] sm:$0xff]
    %v250 = vld [vmem:[#allocation9 + $0x50] sm:$0xff]
    %v251 = vld [vmem:[#allocation9 + $0x58] sm:$0xff]
    %v252 = vld [vmem:[#allocation9 + $0x60] sm:$0xff]
    %v253 = vld [vmem:[#allocation9 + $0x68] sm:$0xff]
    %v254 = vld [vmem:[#allocation9 + $0x70] sm:$0xff]
    %v255 = vld [vmem:[#allocation9 + $0x78] sm:$0xff]
    %v256 = vld [vmem:[#allocation6] sm:$0xff]
    %v257 = vld [vmem:[#allocation2] sm:$0xff]
    %258 = vmatprep.subr.mxu0 0.0
    %259 = vmatpush1.msra.mxu0 %v240
    %260 = vmatprep.subr.mxu0 0.0
    %261 = vmatpush1.msra.mxu0 %v241
    %262 = vmatprep.subr.mxu0 0.0
    %263 = vmatpush1.msra.mxu0 %v242
    %264 = vmatprep.subr.mxu0 0.0
    %265 = vmatpush1.msra.mxu0 %v243
    %266 = vmatprep.subr.mxu0 0.0
    %267 = vmatpush1.msra.mxu0 %v244
    %268 = vmatprep.subr.mxu0 0.0
    %269 = vmatpush1.msra.mxu0 %v245
    %270 = vmatprep.subr.mxu0 0.0
    %271 = vmatpush1.msra.mxu0 %v246
    %272 = vmatprep.subr.mxu0 0.0
    %273 = vmatpush1.msra.mxu0 %v247
    %274 = vmatprep.subr.mxu0 0.0
    %275 = vmatpush1.msra.mxu0 %v248
    %276 = vmatprep.subr.mxu0 0.0
    %277 = vmatpush1.msra.mxu0 %v249
    %278 = vmatprep.subr.mxu0 0.0
    %279 = vmatpush1.msra.mxu0 %v250
    %280 = vmatprep.subr.mxu0 0.0
    %281 = vmatpush1.msra.mxu0 %v251
    %282 = vmatprep.subr.mxu0 0.0
    %283 = vmatpush1.msra.mxu0 %v252
    %284 = vmatprep.subr.mxu0 0.0
    %285 = vmatpush1.msra.mxu0 %v253
    %286 = vmatprep.subr.mxu0 0.0
    %287 = vmatpush1.msra.mxu0 %v254
    %288 = vmatprep.subr.mxu0 0.0
    %289 = vmatpush1.msra.mxu0 %v255
    %290 = vmatprep.subr.mxu0 0.0
    %291 = vmatpush1.msra.mxu0 0.0
    %292 = vmatprep.subr.mxu0 0.0
    %293 = vmatpush1.msra.mxu0 0.0
    %294 = vmatprep.subr.mxu0 0.0
    %295 = vmatpush1.msra.mxu0 0.0
    %296 = vmatprep.subr.mxu0 0.0
    %297 = vmatpush1.msra.mxu0 0.0
    %298 = vmatprep.subr.mxu0 0.0
    %299 = vmatpush1.msra.mxu0 0.0
    %300 = vmatprep.subr.mxu0 0.0
    %301 = vmatpush1.msra.mxu0 0.0
    %302 = vmatprep.subr.mxu0 0.0
    %303 = vmatpush1.msra.mxu0 0.0
    %304 = vmatprep.subr.mxu0 0.0
    %305 = vmatpush1.msra.mxu0 0.0
    %306 = vmatprep.subr.mxu0 0.0
    %307 = vmatpush1.msra.mxu0 0.0
    %308 = vmatprep.subr.mxu0 0.0
    %309 = vmatpush1.msra.mxu0 0.0
    %310 = vmatprep.subr.mxu0 0.0
    %311 = vmatpush1.msra.mxu0 0.0
    %312 = vmatprep.subr.mxu0 0.0
    %313 = vmatpush1.msra.mxu0 0.0
    %314 = vmatprep.subr.mxu0 0.0
    %315 = vmatpush1.msra.mxu0 0.0
    %316 = vmatprep.subr.mxu0 0.0
    %317 = vmatpush1.msra.mxu0 0.0
    %318 = vmatprep.subr.mxu0 0.0
    %319 = vmatpush1.msra.mxu0 0.0
    %320 = vmatprep.subr.mxu0 0.0
    %321 = vmatpush1.msra.mxu0 0.0
    %322 = vmatprep.mubr.f32.mxu0 0.0
    %323 = vmatmul.mubr.f32.gmra.mrb[0].mxu0 %v256
    %v324 = vpop.f32.mrb[0].mxu0
    %v325 = vadd.f32 0.0, %v324
    %v326 = vpop.f32.mrb[0].mxu0
    %327 = vdwg.mxu0
    %v328 = vadd.f32 %v257, %v325
    %v329 = vtanh.pop %v328
    %330 = vst [vmem:[#allocation2] sm:$0xff] %v329
    %s331 = scalar_lea.vmem [#allocation2], 8
    %v332 = vld [vmem:[%s331] sm:$0xff]
    %333 = vmatprep.subr.mxu0 0.0
    %334 = vmatpush1.msra.mxu0 %v240
    %335 = vmatprep.subr.mxu0 0.0
    %336 = vmatpush1.msra.mxu0 %v241
    %337 = vmatprep.subr.mxu0 0.0
    %338 = vmatpush1.msra.mxu0 %v242
    %339 = vmatprep.subr.mxu0 0.0
    %340 = vmatpush1.msra.mxu0 %v243
    %341 = vmatprep.subr.mxu0 0.0
    %342 = vmatpush1.msra.mxu0 %v244
    %343 = vmatprep.subr.mxu0 0.0
    %344 = vmatpush1.msra.mxu0 %v245
    %345 = vmatprep.subr.mxu0 0.0
    %346 = vmatpush1.msra.mxu0 %v246
    %347 = vmatprep.subr.mxu0 0.0
    %348 = vmatpush1.msra.mxu0 %v247
    %349 = vmatprep.subr.mxu0 0.0
    %350 = vmatpush1.msra.mxu0 %v248
    %351 = vmatprep.subr.mxu0 0.0
    %352 = vmatpush1.msra.mxu0 %v249
    %353 = vmatprep.subr.mxu0 0.0
    %354 = vmatpush1.msra.mxu0 %v250
    %355 = vmatprep.subr.mxu0 0.0
    %356 = vmatpush1.msra.mxu0 %v251
    %357 = vmatprep.subr.mxu0 0.0
    %358 = vmatpush1.msra.mxu0 %v252
    %359 = vmatprep.subr.mxu0 0.0
    %360 = vmatpush1.msra.mxu0 %v253
    %361 = vmatprep.subr.mxu0 0.0
    %362 = vmatpush1.msra.mxu0 %v254
    %363 = vmatprep.subr.mxu0 0.0
    %364 = vmatpush1.msra.mxu0 %v255
    %365 = vmatprep.subr.mxu0 0.0
    %366 = vmatpush1.msra.mxu0 0.0
    %367 = vmatprep.subr.mxu0 0.0
    %368 = vmatpush1.msra.mxu0 0.0
    %369 = vmatprep.subr.mxu0 0.0
    %370 = vmatpush1.msra.mxu0 0.0
    %371 = vmatprep.subr.mxu0 0.0
    %372 = vmatpush1.msra.mxu0 0.0
    %373 = vmatprep.subr.mxu0 0.0
    %374 = vmatpush1.msra.mxu0 0.0
    %375 = vmatprep.subr.mxu0 0.0
    %376 = vmatpush1.msra.mxu0 0.0
    %377 = vmatprep.subr.mxu0 0.0
    %378 = vmatpush1.msra.mxu0 0.0
    %379 = vmatprep.subr.mxu0 0.0
    %380 = vmatpush1.msra.mxu0 0.0
    %381 = vmatprep.subr.mxu0 0.0
    %382 = vmatpush1.msra.mxu0 0.0
    %383 = vmatprep.subr.mxu0 0.0
    %384 = vmatpush1.msra.mxu0 0.0
    %385 = vmatprep.subr.mxu0 0.0
    %386 = vmatpush1.msra.mxu0 0.0
    %387 = vmatprep.subr.mxu0 0.0
    %388 = vmatpush1.msra.mxu0 0.0
    %389 = vmatprep.subr.mxu0 0.0
    %390 = vmatpush1.msra.mxu0 0.0
    %391 = vmatprep.subr.mxu0 0.0
    %392 = vmatpush1.msra.mxu0 0.0
    %393 = vmatprep.subr.mxu0 0.0
    %394 = vmatpush1.msra.mxu0 0.0
    %395 = vmatprep.subr.mxu0 0.0
    %396 = vmatpush1.msra.mxu0 0.0
    %397 = vmatprep.mubr.f32.mxu0 0.0
    %398 = vmatmul.mubr.f32.gmra.mrb[0].mxu0 %v329
    %v399 = vpop.f32.mrb[0].mxu0
    %v400 = vadd.f32 0.0, %v399
    %v401 = vpop.f32.mrb[0].mxu0
    %402 = vdwg.mxu0
    %v403 = vadd.f32 %v332, %v400
    %v404 = vtanh.pop %v403
    %405 = vst [vmem:[%s331] sm:$0xff] %v404
    %s406 = scalar_lea.vmem [#allocation2], 16
    %v407 = vld [vmem:[%s406] sm:$0xff]
    %408 = vmatprep.subr.mxu0 0.0
    %409 = vmatpush1.msra.mxu0 %v240
    %410 = vmatprep.subr.mxu0 0.0
    %411 = vmatpush1.msra.mxu0 %v241
    %412 = vmatprep.subr.mxu0 0.0
    %413 = vmatpush1.msra.mxu0 %v242
    %414 = vmatprep.subr.mxu0 0.0
    %415 = vmatpush1.msra.mxu0 %v243
    %416 = vmatprep.subr.mxu0 0.0
    %417 = vmatpush1.msra.mxu0 %v244
    %418 = vmatprep.subr.mxu0 0.0
    %419 = vmatpush1.msra.mxu0 %v245
    %420 = vmatprep.subr.mxu0 0.0
    %421 = vmatpush1.msra.mxu0 %v246
    %422 = vmatprep.subr.mxu0 0.0
    %423 = vmatpush1.msra.mxu0 %v247
    %424 = vmatprep.subr.mxu0 0.0
    %425 = vmatpush1.msra.mxu0 %v248
    %426 = vmatprep.subr.mxu0 0.0
    %427 = vmatpush1.msra.mxu0 %v249
    %428 = vmatprep.subr.mxu0 0.0
    %429 = vmatpush1.msra.mxu0 %v250
    %430 = vmatprep.subr.mxu0 0.0
    %431 = vmatpush1.msra.mxu0 %v251
    %432 = vmatprep.subr.mxu0 0.0
    %433 = vmatpush1.msra.mxu0 %v252
    %434 = vmatprep.subr.mxu0 0.0
    %435 = vmatpush1.msra.mxu0 %v253
    %436 = vmatprep.subr.mxu0 0.0
    %437 = vmatpush1.msra.mxu0 %v254
    %438 = vmatprep.subr.mxu0 0.0
    %439 = vmatpush1.msra.mxu0 %v255
    %440 = vmatprep.subr.mxu0 0.0
    %441 = vmatpush1.msra.mxu0 0.0
    %442 = vmatprep.subr.mxu0 0.0
    %443 = vmatpush1.msra.mxu0 0.0
    %444 = vmatprep.subr.mxu0 0.0
    %445 = vmatpush1.msra.mxu0 0.0
    %446 = vmatprep.subr.mxu0 0.0
    %447 = vmatpush1.msra.mxu0 0.0
    %448 = vmatprep.subr.mxu0 0.0
    %449 = vmatpush1.msra.mxu0 0.0
    %450 = vmatprep.subr.mxu0 0.0
    %451 = vmatpush1.msra.mxu0 0.0
    %452 = vmatprep.subr.mxu0 0.0
    %453 = vmatpush1.msra.mxu0 0.0
    %454 = vmatprep.subr.mxu0 0.0
    %455 = vmatpush1.msra.mxu0 0.0
    %456 = vmatprep.subr.mxu0 0.0
    %457 = vmatpush1.msra.mxu0 0.0
    %458 = vmatprep.subr.mxu0 0.0
    %459 = vmatpush1.msra.mxu0 0.0
    %460 = vmatprep.subr.mxu0 0.0
    %461 = vmatpush1.msra.mxu0 0.0
    %462 = vmatprep.subr.mxu0 0.0
    %463 = vmatpush1.msra.mxu0 0.0
    %464 = vmatprep.subr.mxu0 0.0
    %465 = vmatpush1.msra.mxu0 0.0
    %466 = vmatprep.subr.mxu0 0.0
    %467 = vmatpush1.msra.mxu0 0.0
    %468 = vmatprep.subr.mxu0 0.0
    %469 = vmatpush1.msra.mxu0 0.0
    %470 = vmatprep.subr.mxu0 0.0
    %471 = vmatpush1.msra.mxu0 0.0
    %472 = vmatprep.mubr.f32.mxu0 0.0
    %473 = vmatmul.mubr.f32.gmra.mrb[0].mxu0 %v404
    %v474 = vpop.f32.mrb[0].mxu0
    %v475 = vadd.f32 0.0, %v474
    %v476 = vpop.f32.mrb[0].mxu0
    %477 = vdwg.mxu0
    %v478 = vadd.f32 %v407, %v475
    %v479 = vtanh.pop %v478
    %480 = vst [vmem:[%s406] sm:$0xff] %v479
    %s481 = scalar_lea.vmem [#allocation2], 24
    %v482 = vld [vmem:[%s481] sm:$0xff]
    %483 = vmatprep.subr.mxu0 0.0
    %484 = vmatpush1.msra.mxu0 %v240
    %485 = vmatprep.subr.mxu0 0.0
    %486 = vmatpush1.msra.mxu0 %v241
    %487 = vmatprep.subr.mxu0 0.0
    %488 = vmatpush1.msra.mxu0 %v242
    %489 = vmatprep.subr.mxu0 0.0
    %490 = vmatpush1.msra.mxu0 %v243
    %491 = vmatprep.subr.mxu0 0.0
    %492 = vmatpush1.msra.mxu0 %v244
    %493 = vmatprep.subr.mxu0 0.0
    %494 = vmatpush1.msra.mxu0 %v245
    %495 = vmatprep.subr.mxu0 0.0
    %496 = vmatpush1.msra.mxu0 %v246
    %497 = vmatprep.subr.mxu0 0.0
    %498 = vmatpush1.msra.mxu0 %v247
    %499 = vmatprep.subr.mxu0 0.0
    %500 = vmatpush1.msra.mxu0 %v248
    %501 = vmatprep.subr.mxu0 0.0
    %502 = vmatpush1.msra.mxu0 %v249
    %503 = vmatprep.subr.mxu0 0.0
    %504 = vmatpush1.msra.mxu0 %v250
    %505 = vmatprep.subr.mxu0 0.0
    %506 = vmatpush1.msra.mxu0 %v251
    %507 = vmatprep.subr.mxu0 0.0
    %508 = vmatpush1.msra.mxu0 %v252
    %509 = vmatprep.subr.mxu0 0.0
    %510 = vmatpush1.msra.mxu0 %v253
    %511 = vmatprep.subr.mxu0 0.0
    %512 = vmatpush1.msra.mxu0 %v254
    %513 = vmatprep.subr.mxu0 0.0
    %514 = vmatpush1.msra.mxu0 %v255
    %515 = vmatprep.subr.mxu0 0.0
    %516 = vmatpush1.msra.mxu0 0.0
    %517 = vmatprep.subr.mxu0 0.0
    %518 = vmatpush1.msra.mxu0 0.0
    %519 = vmatprep.subr.mxu0 0.0
    %520 = vmatpush1.msra.mxu0 0.0
    %521 = vmatprep.subr.mxu0 0.0
    %522 = vmatpush1.msra.mxu0 0.0
    %523 = vmatprep.subr.mxu0 0.0
    %524 = vmatpush1.msra.mxu0 0.0
    %525 = vmatprep.subr.mxu0 0.0
    %526 = vmatpush1.msra.mxu0 0.0
    %527 = vmatprep.subr.mxu0 0.0
    %528 = vmatpush1.msra.mxu0 0.0
    %529 = vmatprep.subr.mxu0 0.0
    %530 = vmatpush1.msra.mxu0 0.0
    %531 = vmatprep.subr.mxu0 0.0
    %532 = vmatpush1.msra.mxu0 0.0
    %533 = vmatprep.subr.mxu0 0.0
    %534 = vmatpush1.msra.mxu0 0.0
    %535 = vmatprep.subr.mxu0 0.0
    %536 = vmatpush1.msra.mxu0 0.0
    %537 = vmatprep.subr.mxu0 0.0
    %538 = vmatpush1.msra.mxu0 0.0
    %539 = vmatprep.subr.mxu0 0.0
    %540 = vmatpush1.msra.mxu0 0.0
    %541 = vmatprep.subr.mxu0 0.0
    %542 = vmatpush1.msra.mxu0 0.0
    %543 = vmatprep.subr.mxu0 0.0
    %544 = vmatpush1.msra.mxu0 0.0
    %545 = vmatprep.subr.mxu0 0.0
    %546 = vmatpush1.msra.mxu0 0.0
    %547 = vmatprep.mubr.f32.mxu0 0.0
    %548 = vmatmul.mubr.f32.gmra.mrb[0].mxu0 %v479
    %v549 = vpop.f32.mrb[0].mxu0
    %v550 = vadd.f32 0.0, %v549
    %v551 = vpop.f32.mrb[0].mxu0
    %552 = vdwg.mxu0
    %v553 = vadd.f32 %v482, %v550
    %v554 = vtanh.pop %v553
    %555 = vst [vmem:[%s481] sm:$0xff] %v554
    %s556 = scalar_lea.vmem [#allocation2], 32
    %v557 = vld [vmem:[%s556] sm:$0xff]
    %558 = vmatprep.subr.mxu0 0.0
    %559 = vmatpush1.msra.mxu0 %v240
    %560 = vmatprep.subr.mxu0 0.0
    %561 = vmatpush1.msra.mxu0 %v241
    %562 = vmatprep.subr.mxu0 0.0
    %563 = vmatpush1.msra.mxu0 %v242
    %564 = vmatprep.subr.mxu0 0.0
    %565 = vmatpush1.msra.mxu0 %v243
    %566 = vmatprep.subr.mxu0 0.0
    %567 = vmatpush1.msra.mxu0 %v244
    %568 = vmatprep.subr.mxu0 0.0
    %569 = vmatpush1.msra.mxu0 %v245
    %570 = vmatprep.subr.mxu0 0.0
    %571 = vmatpush1.msra.mxu0 %v246
    %572 = vmatprep.subr.mxu0 0.0
    %573 = vmatpush1.msra.mxu0 %v247
    %574 = vmatprep.subr.mxu0 0.0
    %575 = vmatpush1.msra.mxu0 %v248
    %576 = vmatprep.subr.mxu0 0.0
    %577 = vmatpush1.msra.mxu0 %v249
    %578 = vmatprep.subr.mxu0 0.0
    %579 = vmatpush1.msra.mxu0 %v250
    %580 = vmatprep.subr.mxu0 0.0
    %581 = vmatpush1.msra.mxu0 %v251
    %582 = vmatprep.subr.mxu0 0.0
    %583 = vmatpush1.msra.mxu0 %v252
    %584 = vmatprep.subr.mxu0 0.0
    %585 = vmatpush1.msra.mxu0 %v253
    %586 = vmatprep.subr.mxu0 0.0
    %587 = vmatpush1.msra.mxu0 %v254
    %588 = vmatprep.subr.mxu0 0.0
    %589 = vmatpush1.msra.mxu0 %v255
    %590 = vmatprep.subr.mxu0 0.0
    %591 = vmatpush1.msra.mxu0 0.0
    %592 = vmatprep.subr.mxu0 0.0
    %593 = vmatpush1.msra.mxu0 0.0
    %594 = vmatprep.subr.mxu0 0.0
    %595 = vmatpush1.msra.mxu0 0.0
    %596 = vmatprep.subr.mxu0 0.0
    %597 = vmatpush1.msra.mxu0 0.0
    %598 = vmatprep.subr.mxu0 0.0
    %599 = vmatpush1.msra.mxu0 0.0
    %600 = vmatprep.subr.mxu0 0.0
    %601 = vmatpush1.msra.mxu0 0.0
    %602 = vmatprep.subr.mxu0 0.0
    %603 = vmatpush1.msra.mxu0 0.0
    %604 = vmatprep.subr.mxu0 0.0
    %605 = vmatpush1.msra.mxu0 0.0
    %606 = vmatprep.subr.mxu0 0.0
    %607 = vmatpush1.msra.mxu0 0.0
    %608 = vmatprep.subr.mxu0 0.0
    %609 = vmatpush1.msra.mxu0 0.0
    %610 = vmatprep.subr.mxu0 0.0
    %611 = vmatpush1.msra.mxu0 0.0
    %612 = vmatprep.subr.mxu0 0.0
    %613 = vmatpush1.msra.mxu0 0.0
    %614 = vmatprep.subr.mxu0 0.0
    %615 = vmatpush1.msra.mxu0 0.0
    %616 = vmatprep.subr.mxu0 0.0
    %617 = vmatpush1.msra.mxu0 0.0
    %618 = vmatprep.subr.mxu0 0.0
    %619 = vmatpush1.msra.mxu0 0.0
    %620 = vmatprep.subr.mxu0 0.0
    %621 = vmatpush1.msra.mxu0 0.0
    %622 = vmatprep.mubr.f32.mxu0 0.0
    %623 = vmatmul.mubr.f32.gmra.mrb[0].mxu0 %v554
    %v624 = vpop.f32.mrb[0].mxu0
    %v625 = vadd.f32 0.0, %v624
    %v626 = vpop.f32.mrb[0].mxu0
    %627 = vdwg.mxu0
    %v628 = vadd.f32 %v557, %v625
    %v629 = vtanh.pop %v628
    %630 = vst [vmem:[%s556] sm:$0xff] %v629
    %s631 = scalar_lea.vmem [#allocation2], 40
    %v632 = vld [vmem:[%s631] sm:$0xff]
    %633 = vmatprep.subr.mxu0 0.0
    %634 = vmatpush1.msra.mxu0 %v240
    %635 = vmatprep.subr.mxu0 0.0
    %636 = vmatpush1.msra.mxu0 %v241
    %637 = vmatprep.subr.mxu0 0.0
    %638 = vmatpush1.msra.mxu0 %v242
    %639 = vmatprep.subr.mxu0 0.0
    %640 = vmatpush1.msra.mxu0 %v243
    %641 = vmatprep.subr.mxu0 0.0
    %642 = vmatpush1.msra.mxu0 %v244
    %643 = vmatprep.subr.mxu0 0.0
    %644 = vmatpush1.msra.mxu0 %v245
    %645 = vmatprep.subr.mxu0 0.0
    %646 = vmatpush1.msra.mxu0 %v246
    %647 = vmatprep.subr.mxu0 0.0
    %648 = vmatpush1.msra.mxu0 %v247
    %649 = vmatprep.subr.mxu0 0.0
    %650 = vmatpush1.msra.mxu0 %v248
    %651 = vmatprep.subr.mxu0 0.0
    %652 = vmatpush1.msra.mxu0 %v249
    %653 = vmatprep.subr.mxu0 0.0
    %654 = vmatpush1.msra.mxu0 %v250
    %655 = vmatprep.subr.mxu0 0.0
    %656 = vmatpush1.msra.mxu0 %v251
    %657 = vmatprep.subr.mxu0 0.0
    %658 = vmatpush1.msra.mxu0 %v252
    %659 = vmatprep.subr.mxu0 0.0
    %660 = vmatpush1.msra.mxu0 %v253
    %661 = vmatprep.subr.mxu0 0.0
    %662 = vmatpush1.msra.mxu0 %v254
    %663 = vmatprep.subr.mxu0 0.0
    %664 = vmatpush1.msra.mxu0 %v255
    %665 = vmatprep.subr.mxu0 0.0
    %666 = vmatpush1.msra.mxu0 0.0
    %667 = vmatprep.subr.mxu0 0.0
    %668 = vmatpush1.msra.mxu0 0.0
    %669 = vmatprep.subr.mxu0 0.0
    %670 = vmatpush1.msra.mxu0 0.0
    %671 = vmatprep.subr.mxu0 0.0
    %672 = vmatpush1.msra.mxu0 0.0
    %673 = vmatprep.subr.mxu0 0.0
    %674 = vmatpush1.msra.mxu0 0.0
    %675 = vmatprep.subr.mxu0 0.0
    %676 = vmatpush1.msra.mxu0 0.0
    %677 = vmatprep.subr.mxu0 0.0
    %678 = vmatpush1.msra.mxu0 0.0
    %679 = vmatprep.subr.mxu0 0.0
    %680 = vmatpush1.msra.mxu0 0.0
    %681 = vmatprep.subr.mxu0 0.0
    %682 = vmatpush1.msra.mxu0 0.0
    %683 = vmatprep.subr.mxu0 0.0
    %684 = vmatpush1.msra.mxu0 0.0
    %685 = vmatprep.subr.mxu0 0.0
    %686 = vmatpush1.msra.mxu0 0.0
    %687 = vmatprep.subr.mxu0 0.0
    %688 = vmatpush1.msra.mxu0 0.0
    %689 = vmatprep.subr.mxu0 0.0
    %690 = vmatpush1.msra.mxu0 0.0
    %691 = vmatprep.subr.mxu0 0.0
    %692 = vmatpush1.msra.mxu0 0.0
    %693 = vmatprep.subr.mxu0 0.0
    %694 = vmatpush1.msra.mxu0 0.0
    %695 = vmatprep.subr.mxu0 0.0
    %696 = vmatpush1.msra.mxu0 0.0
    %697 = vmatprep.mubr.f32.mxu0 0.0
    %698 = vmatmul.mubr.f32.gmra.mrb[0].mxu0 %v629
    %v699 = vpop.f32.mrb[0].mxu0
    %v700 = vadd.f32 0.0, %v699
    %v701 = vpop.f32.mrb[0].mxu0
    %702 = vdwg.mxu0
    %v703 = vadd.f32 %v632, %v700
    %v704 = vtanh.pop %v703
    %705 = vst [vmem:[%s631] sm:$0xff] %v704
    %s706 = scalar_lea.vmem [#allocation2], 48
    %v707 = vld [vmem:[%s706] sm:$0xff]
    %708 = vmatprep.subr.mxu0 0.0
    %709 = vmatpush1.msra.mxu0 %v240
    %710 = vmatprep.subr.mxu0 0.0
    %711 = vmatpush1.msra.mxu0 %v241
    %712 = vmatprep.subr.mxu0 0.0
    %713 = vmatpush1.msra.mxu0 %v242
    %714 = vmatprep.subr.mxu0 0.0
    %715 = vmatpush1.msra.mxu0 %v243
    %716 = vmatprep.subr.mxu0 0.0
    %717 = vmatpush1.msra.mxu0 %v244
    %718 = vmatprep.subr.mxu0 0.0
    %719 = vmatpush1.msra.mxu0 %v245
    %720 = vmatprep.subr.mxu0 0.0
    %721 = vmatpush1.msra.mxu0 %v246
    %722 = vmatprep.subr.mxu0 0.0
    %723 = vmatpush1.msra.mxu0 %v247
    %724 = vmatprep.subr.mxu0 0.0
    %725 = vmatpush1.msra.mxu0 %v248
    %726 = vmatprep.subr.mxu0 0.0
    %727 = vmatpush1.msra.mxu0 %v249
    %728 = vmatprep.subr.mxu0 0.0
    %729 = vmatpush1.msra.mxu0 %v250
    %730 = vmatprep.subr.mxu0 0.0
    %731 = vmatpush1.msra.mxu0 %v251
    %732 = vmatprep.subr.mxu0 0.0
    %733 = vmatpush1.msra.mxu0 %v252
    %734 = vmatprep.subr.mxu0 0.0
    %735 = vmatpush1.msra.mxu0 %v253
    %736 = vmatprep.subr.mxu0 0.0
    %737 = vmatpush1.msra.mxu0 %v254
    %738 = vmatprep.subr.mxu0 0.0
    %739 = vmatpush1.msra.mxu0 %v255
    %740 = vmatprep.subr.mxu0 0.0
    %741 = vmatpush1.msra.mxu0 0.0
    %742 = vmatprep.subr.mxu0 0.0
    %743 = vmatpush1.msra.mxu0 0.0
    %744 = vmatprep.subr.mxu0 0.0
    %745 = vmatpush1.msra.mxu0 0.0
    %746 = vmatprep.subr.mxu0 0.0
    %747 = vmatpush1.msra.mxu0 0.0
    %748 = vmatprep.subr.mxu0 0.0
    %749 = vmatpush1.msra.mxu0 0.0
    %750 = vmatprep.subr.mxu0 0.0
    %751 = vmatpush1.msra.mxu0 0.0
    %752 = vmatprep.subr.mxu0 0.0
    %753 = vmatpush1.msra.mxu0 0.0
    %754 = vmatprep.subr.mxu0 0.0
    %755 = vmatpush1.msra.mxu0 0.0
    %756 = vmatprep.subr.mxu0 0.0
    %757 = vmatpush1.msra.mxu0 0.0
    %758 = vmatprep.subr.mxu0 0.0
    %759 = vmatpush1.msra.mxu0 0.0
    %760 = vmatprep.subr.mxu0 0.0
    %761 = vmatpush1.msra.mxu0 0.0
    %762 = vmatprep.subr.mxu0 0.0
    %763 = vmatpush1.msra.mxu0 0.0
    %764 = vmatprep.subr.mxu0 0.0
    %765 = vmatpush1.msra.mxu0 0.0
    %766 = vmatprep.subr.mxu0 0.0
    %767 = vmatpush1.msra.mxu0 0.0
    %768 = vmatprep.subr.mxu0 0.0
    %769 = vmatpush1.msra.mxu0 0.0
    %770 = vmatprep.subr.mxu0 0.0
    %771 = vmatpush1.msra.mxu0 0.0
    %772 = vmatprep.mubr.f32.mxu0 0.0
    %773 = vmatmul.mubr.f32.gmra.mrb[0].mxu0 %v704
    %v774 = vpop.f32.mrb[0].mxu0
    %v775 = vadd.f32 0.0, %v774
    %v776 = vpop.f32.mrb[0].mxu0
    %777 = vdwg.mxu0
    %v778 = vadd.f32 %v707, %v775
    %v779 = vtanh.pop %v778
    %780 = vst [vmem:[%s706] sm:$0xff] %v779
    %s781 = scalar_lea.vmem [#allocation2], 56
    %v782 = vld [vmem:[%s781] sm:$0xff]
    %783 = vmatprep.subr.mxu0 0.0
    %784 = vmatpush1.msra.mxu0 %v240
    %785 = vmatprep.subr.mxu0 0.0
    %786 = vmatpush1.msra.mxu0 %v241
    %787 = vmatprep.subr.mxu0 0.0
    %788 = vmatpush1.msra.mxu0 %v242
    %789 = vmatprep.subr.mxu0 0.0
    %790 = vmatpush1.msra.mxu0 %v243
    %791 = vmatprep.subr.mxu0 0.0
    %792 = vmatpush1.msra.mxu0 %v244
    %793 = vmatprep.subr.mxu0 0.0
    %794 = vmatpush1.msra.mxu0 %v245
    %795 = vmatprep.subr.mxu0 0.0
    %796 = vmatpush1.msra.mxu0 %v246
    %797 = vmatprep.subr.mxu0 0.0
    %798 = vmatpush1.msra.mxu0 %v247
    %799 = vmatprep.subr.mxu0 0.0
    %800 = vmatpush1.msra.mxu0 %v248
    %801 = vmatprep.subr.mxu0 0.0
    %802 = vmatpush1.msra.mxu0 %v249
    %803 = vmatprep.subr.mxu0 0.0
    %804 = vmatpush1.msra.mxu0 %v250
    %805 = vmatprep.subr.mxu0 0.0
    %806 = vmatpush1.msra.mxu0 %v251
    %807 = vmatprep.subr.mxu0 0.0
    %808 = vmatpush1.msra.mxu0 %v252
    %809 = vmatprep.subr.mxu0 0.0
    %810 = vmatpush1.msra.mxu0 %v253
    %811 = vmatprep.subr.mxu0 0.0
    %812 = vmatpush1.msra.mxu0 %v254
    %813 = vmatprep.subr.mxu0 0.0
    %814 = vmatpush1.msra.mxu0 %v255
    %815 = vmatprep.subr.mxu0 0.0
    %816 = vmatpush1.msra.mxu0 0.0
    %817 = vmatprep.subr.mxu0 0.0
    %818 = vmatpush1.msra.mxu0 0.0
    %819 = vmatprep.subr.mxu0 0.0
    %820 = vmatpush1.msra.mxu0 0.0
    %821 = vmatprep.subr.mxu0 0.0
    %822 = vmatpush1.msra.mxu0 0.0
    %823 = vmatprep.subr.mxu0 0.0
    %824 = vmatpush1.msra.mxu0 0.0
    %825 = vmatprep.subr.mxu0 0.0
    %826 = vmatpush1.msra.mxu0 0.0
    %827 = vmatprep.subr.mxu0 0.0
    %828 = vmatpush1.msra.mxu0 0.0
    %829 = vmatprep.subr.mxu0 0.0
    %830 = vmatpush1.msra.mxu0 0.0
    %831 = vmatprep.subr.mxu0 0.0
    %832 = vmatpush1.msra.mxu0 0.0
    %833 = vmatprep.subr.mxu0 0.0
    %834 = vmatpush1.msra.mxu0 0.0
    %835 = vmatprep.subr.mxu0 0.0
    %836 = vmatpush1.msra.mxu0 0.0
    %837 = vmatprep.subr.mxu0 0.0
    %838 = vmatpush1.msra.mxu0 0.0
    %839 = vmatprep.subr.mxu0 0.0
    %840 = vmatpush1.msra.mxu0 0.0
    %841 = vmatprep.subr.mxu0 0.0
    %842 = vmatpush1.msra.mxu0 0.0
    %843 = vmatprep.subr.mxu0 0.0
    %844 = vmatpush1.msra.mxu0 0.0
    %845 = vmatprep.subr.mxu0 0.0
    %846 = vmatpush1.msra.mxu0 0.0
    %847 = vmatprep.mubr.f32.mxu0 0.0
    %848 = vmatmul.mubr.f32.gmra.mrb[0].mxu0 %v779
    %v849 = vpop.f32.mrb[0].mxu0
    %v850 = vadd.f32 0.0, %v849
    %v851 = vpop.f32.mrb[0].mxu0
    %852 = vdwg.mxu0
    %v853 = vadd.f32 %v782, %v850
    %v854 = vtanh.pop %v853
    %855 = vst [vmem:[%s781] sm:$0xff] %v854
    %856 = vst [vmem:[#allocation13] sm:$0xff] %v854
    %v857 = vld [vmem:[#allocation2] sm:$0xff]
    %v858 = vld [vmem:[#allocation2 + $0x8] sm:$0xff]
    %v859 = vld [vmem:[#allocation2 + $0x10] sm:$0xff]
    %v860 = vld [vmem:[#allocation2 + $0x18] sm:$0xff]
    %v861 = vld [vmem:[#allocation2 + $0x20] sm:$0xff]
    %v862 = vld [vmem:[#allocation2 + $0x28] sm:$0xff]
    %v863 = vld [vmem:[#allocation2 + $0x30] sm:$0xff]
    %v864 = vld [vmem:[#allocation2 + $0x38] sm:$0xff]
    %v865 = vld [vmem:[#allocation11] sm:$0xff]
    %v866 = vld [vmem:[#allocation11 + $0x8] sm:$0xff]
    %v867 = vld [vmem:[#allocation11 + $0x10] sm:$0xff]
    %v868 = vld [vmem:[#allocation11 + $0x18] sm:$0xff]
    %v869 = vld [vmem:[#allocation11 + $0x20] sm:$0xff]
    %v870 = vld [vmem:[#allocation11 + $0x28] sm:$0xff]
    %v871 = vld [vmem:[#allocation11 + $0x30] sm:$0xff]
    %v872 = vld [vmem:[#allocation11 + $0x38] sm:$0xff]
    %v873 = vld [vmem:[#allocation11 + $0x40] sm:$0xff]
    %v874 = vld [vmem:[#allocation11 + $0x48] sm:$0xff]
    %v875 = vld [vmem:[#allocation11 + $0x50] sm:$0xff]
    %v876 = vld [vmem:[#allocation11 + $0x58] sm:$0xff]
    %v877 = vld [vmem:[#allocation11 + $0x60] sm:$0xff]
    %v878 = vld [vmem:[#allocation11 + $0x68] sm:$0xff]
    %v879 = vld [vmem:[#allocation11 + $0x70] sm:$0xff]
    %v880 = vld [vmem:[#allocation11 + $0x78] sm:$0xff]
    %v881 = vld [vmem:[%s6] sm:$0x1]
    %v883 = vlaneseq
    %v884 = vshrl.u32 %v883, 7
    %v885 = vsub.s32 0, %v884
    %v886 = vrot.slane %v881, %v885
    %888 = vmatprep.subr.mxu0 0.0
    %889 = vmatpush1.msra.mxu0 %v865
    %890 = vmatprep.subr.mxu0 0.0
    %891 = vmatpush1.msra.mxu0 %v866
    %892 = vmatprep.subr.mxu0 0.0
    %893 = vmatpush1.msra.mxu0 %v867
    %894 = vmatprep.subr.mxu0 0.0
    %895 = vmatpush1.msra.mxu0 %v868
    %896 = vmatprep.subr.mxu0 0.0
    %897 = vmatpush1.msra.mxu0 %v869
    %898 = vmatprep.subr.mxu0 0.0
    %899 = vmatpush1.msra.mxu0 %v870
    %900 = vmatprep.subr.mxu0 0.0
    %901 = vmatpush1.msra.mxu0 %v871
    %902 = vmatprep.subr.mxu0 0.0
    %903 = vmatpush1.msra.mxu0 %v872
    %904 = vmatprep.subr.mxu0 0.0
    %905 = vmatpush1.msra.mxu0 %v873
    %906 = vmatprep.subr.mxu0 0.0
    %907 = vmatpush1.msra.mxu0 %v874
    %908 = vmatprep.subr.mxu0 0.0
    %909 = vmatpush1.msra.mxu0 %v875
    %910 = vmatprep.subr.mxu0 0.0
    %911 = vmatpush1.msra.mxu0 %v876
    %912 = vmatprep.subr.mxu0 0.0
    %913 = vmatpush1.msra.mxu0 %v877
    %914 = vmatprep.subr.mxu0 0.0
    %915 = vmatpush1.msra.mxu0 %v878
    %916 = vmatprep.subr.mxu0 0.0
    %917 = vmatpush1.msra.mxu0 %v879
    %918 = vmatprep.subr.mxu0 0.0
    %919 = vmatpush1.msra.mxu0 %v880
    %920 = vmatprep.subr.mxu0 0.0
    %921 = vmatpush1.msra.mxu0 0.0
    %922 = vmatprep.subr.mxu0 0.0
    %923 = vmatpush1.msra.mxu0 0.0
    %924 = vmatprep.subr.mxu0 0.0
    %925 = vmatpush1.msra.mxu0 0.0
    %926 = vmatprep.subr.mxu0 0.0
    %927 = vmatpush1.msra.mxu0 0.0
    %928 = vmatprep.subr.mxu0 0.0
    %929 = vmatpush1.msra.mxu0 0.0
    %930 = vmatprep.subr.mxu0 0.0
    %931 = vmatpush1.msra.mxu0 0.0
    %932 = vmatprep.subr.mxu0 0.0
    %933 = vmatpush1.msra.mxu0 0.0
    %934 = vmatprep.subr.mxu0 0.0
    %935 = vmatpush1.msra.mxu0 0.0
    %936 = vmatprep.subr.mxu0 0.0
    %937 = vmatpush1.msra.mxu0 0.0
    %938 = vmatprep.subr.mxu0 0.0
    %939 = vmatpush1.msra.mxu0 0.0
    %940 = vmatprep.subr.mxu0 0.0
    %941 = vmatpush1.msra.mxu0 0.0
    %942 = vmatprep.subr.mxu0 0.0
    %943 = vmatpush1.msra.mxu0 0.0
    %944 = vmatprep.subr.mxu0 0.0
    %945 = vmatpush1.msra.mxu0 0.0
    %946 = vmatprep.subr.mxu0 0.0
    %947 = vmatpush1.msra.mxu0 0.0
    %948 = vmatprep.subr.mxu0 0.0
    %949 = vmatpush1.msra.mxu0 0.0
    %950 = vmatprep.subr.mxu0 0.0
    %951 = vmatpush1.msra.mxu0 0.0
    %952 = vmatprep.mubr.f32.mxu0 0.0
    %953 = vmatmul.mubr.f32.gmra.mrb[0].mxu0 %v857
    %v954 = vpop.f32.mrb[0].mxu0
    %v955 = vadd.f32 %v886, %v954
    %v956 = vpop.f32.mrb[0].mxu0
    %957 = vmatprep.mubr.f32.mxu0 0.0
    %958 = vmatmul.mubr.f32.gmra.mrb[0].mxu0 %v858
    %v959 = vpop.f32.mrb[0].mxu0
    %v960 = vadd.f32 %v886, %v959
    %v961 = vpop.f32.mrb[0].mxu0
    %962 = vmatprep.mubr.f32.mxu0 0.0
    %963 = vmatmul.mubr.f32.gmra.mrb[0].mxu0 %v859
    %v964 = vpop.f32.mrb[0].mxu0
    %v965 = vadd.f32 %v886, %v964
    %v966 = vpop.f32.mrb[0].mxu0
    %967 = vmatprep.mubr.f32.mxu0 0.0
    %968 = vmatmul.mubr.f32.gmra.mrb[0].mxu0 %v860
    %v969 = vpop.f32.mrb[0].mxu0
    %v970 = vadd.f32 %v886, %v969
    %v971 = vpop.f32.mrb[0].mxu0
    %972 = vmatprep.mubr.f32.mxu0 0.0
    %973 = vmatmul.mubr.f32.gmra.mrb[0].mxu0 %v861
    %v974 = vpop.f32.mrb[0].mxu0
    %v975 = vadd.f32 %v886, %v974
    %v976 = vpop.f32.mrb[0].mxu0
    %977 = vmatprep.mubr.f32.mxu0 0.0
    %978 = vmatmul.mubr.f32.gmra.mrb[0].mxu0 %v862
    %v979 = vpop.f32.mrb[0].mxu0
    %v980 = vadd.f32 %v886, %v979
    %v981 = vpop.f32.mrb[0].mxu0
    %982 = vmatprep.mubr.f32.mxu0 0.0
    %983 = vmatmul.mubr.f32.gmra.mrb[0].mxu0 %v863
    %v984 = vpop.f32.mrb[0].mxu0
    %v985 = vadd.f32 %v886, %v984
    %v986 = vpop.f32.mrb[0].mxu0
    %987 = vmatprep.mubr.f32.mxu0 0.0
    %988 = vmatmul.mubr.f32.gmra.mrb[0].mxu0 %v864
    %v989 = vpop.f32.mrb[0].mxu0
    %v990 = vadd.f32 %v886, %v989
    %v991 = vpop.f32.mrb[0].mxu0
    %992 = vdwg.mxu0
    %993 = vst [vmem:[#allocation12] sm:$0xff] %v955
    %994 = vst [vmem:[#allocation12 + $0x8] sm:$0xff] %v960
    %995 = vst [vmem:[#allocation12 + $0x10] sm:$0xff] %v965
    %996 = vst [vmem:[#allocation12 + $0x18] sm:$0xff] %v970
    %997 = vst [vmem:[#allocation12 + $0x20] sm:$0xff] %v975
    %998 = vst [vmem:[#allocation12 + $0x28] sm:$0xff] %v980
    %999 = vst [vmem:[#allocation12 + $0x30] sm:$0xff] %v985
    %1000 = vst [vmem:[#allocation12 + $0x38] sm:$0xff] %v990
    // Predicated region
    $region50: #{tpu_custom_call.1} parent=1 // pred_check
      _
    $region51: #{tpu_custom_call.1} parent=1 // pred_check_branch
      %1002 = sbr.rel (0) target = $region53
    $region52: #{tpu_custom_call.1} parent=1 // pred_region
      %s1004 = ssub.s32 1024, 1024
      %1005 = vsyncadd [#allocation5], %s1004
      %s1006 = sshll.u32 [#allocation12], 4
      %s1007 = int_to_ptr.vmem [resolvable:$true] %s1006
      %1012 = dma.vmem_to_hbm [thread:$0]  %s1007, 1024, %s7, [#allocation5], 128, 128, 8
    $region53: #{tpu_custom_call.1} parent=1 // pred_fallthru
      _
    // Predicated region
    $region54: #{tpu_custom_call.1} parent=1 // pred_check
      _
    $region55: #{tpu_custom_call.1} parent=1 // pred_check_branch
      %1014 = sbr.rel (0) target = $region57
    $region56: #{tpu_custom_call.1} parent=1 // pred_region
      %s1016 = ssub.s32 128, 128
      %1017 = vsyncadd [#allocation14], %s1016
      %s1019 = sshll.u32 [#allocation13], 4
      %s1020 = int_to_ptr.vmem [resolvable:$true] %s1019
      %1022 = dma.vmem_to_hbm [thread:$0]  %s1020, 128, %s8, [#allocation14]
    $region57: #{tpu_custom_call.1} parent=1 // pred_fallthru
      _
    // Predicated region
    $region58: #{tpu_custom_call.1} parent=1 // pred_check
      _
    $region59: #{tpu_custom_call.1} parent=1 // pred_check_branch
      %1024 = sbr.rel (0) target = $region61
    $region60: #{tpu_custom_call.1} parent=1 // pred_region
      %1025 = dma.done [#allocation5], 1024
    $region61: #{tpu_custom_call.1} parent=1 // pred_fallthru
      _
    // Predicated region
    $region62: #{tpu_custom_call.1} parent=1 // pred_check
      _
    $region63: #{tpu_custom_call.1} parent=1 // pred_check_branch
      %1027 = sbr.rel (0) target = $region65
    $region64: #{tpu_custom_call.1} parent=1 // pred_region
      %1028 = dma.done [#allocation14], 128
    $region65: #{tpu_custom_call.1} parent=1 // pred_fallthru
      _
    %1029 = vsyncpa [#allocation4], 1
    %1030 = vsyncpa [#allocation7], 1
    %1031 = vsyncpa [#allocation10], 1
    %1032 = vsyncpa [#allocation5], 1
    %1033 = vsyncpa [#allocation14], 1

</llo_original>
